<compile_context>
chip_gen: v5e
topology: v5e:2x2
jax: 0.10.0
libtpu: 0.0.40
codegen_flags: <defaults>
</compile_context>

<pallas_src>
import jax
import jax.numpy as jnp
from jax.experimental import pallas as pl
from jax.experimental.pallas import tpu as pltpu


def _add_kernel(x_ref, w_ref, b_ref, o_ref):
    """o = w * x + b on one (TM, TN) tile.

    x_ref: (TM, TN)  input tile
    w_ref: (TM, 1)   folded per-row scale   (broadcasts along lanes for free)
    b_ref: (TM, 1)   folded per-row bias
    o_ref: (TM, TN)  output tile
    """
    o_ref[...] = (w_ref[...] * x_ref[...] + b_ref[...]).astype(o_ref.dtype)


def add_forward(x, weights, biases, *, target_rows: int = 512, target_lanes: int = 1024):
    """Pallas wrapper for the `Add` module.

    x:       (B, C, H, W) float32, NCHW
    weights: (K, C) per-channel scales, one row per "add module"
    biases:  (K, C) per-channel biases
    returns: (B, C, H, W) = sum_k (weights[k, c] * x + biases[k, c])

    Tile sizing: blocks of (<=512 rows, <=1024 lanes) f32.  x + o double
    buffered costs at most 2*2*512*1024*4 B = 8 MiB of VMEM, comfortably under
    the default scoped-VMEM limit on v5e (16 MiB), v6e (32 MiB) and v7x
    (32 MiB), while keeping lane-dense >=128-wide stores and large enough
    tiles (~0.5M elem) to amortize per-grid-step overhead.  Both grid axes are
    'parallel' so v7x's two TensorCores can both stream.
    """
    B, C, H, W = x.shape
    M = B * C
    N = H * W

    # --- fold the K modules into one (w_sum, b_sum) pair (O(K*C) work) ------
    w_sum = weights.sum(axis=0)  # (C,)
    b_sum = biases.sum(axis=0)   # (C,)
    # Expand per-channel -> per-(batch,channel) row, laid out as an (M, 1)
    # column so the in-kernel broadcast is along the lane axis (free).
    w_rows = jnp.broadcast_to(w_sum[None, :], (B, C)).reshape(M, 1)
    b_rows = jnp.broadcast_to(b_sum[None, :], (B, C)).reshape(M, 1)

    x2d = x.reshape(M, N)

    # --- tile sizes ----------------------------------------------------------
    # Block dims must be divisible by (8, 128) or equal the full extent.
    tm = M if M <= target_rows else target_rows      # target_rows % 8   == 0
    tn = N if N <= target_lanes else target_lanes    # target_lanes % 128 == 0
    grid = (pl.cdiv(M, tm), pl.cdiv(N, tn))

    out2d = pl.pallas_call(
        _add_kernel,
        out_shape=jax.ShapeDtypeStruct((M, N), x.dtype),
        grid_spec=pltpu.PrefetchScalarGridSpec(
            num_scalar_prefetch=0,
            grid=grid,
            in_specs=[
                pl.BlockSpec((tm, tn), lambda i, j: (i, j)),  # x tile
                pl.BlockSpec((tm, 1), lambda i, j: (i, 0)),   # folded scales
                pl.BlockSpec((tm, 1), lambda i, j: (i, 0)),   # folded biases
            ],
            out_specs=pl.BlockSpec((tm, tn), lambda i, j: (i, j)),
        ),
        compiler_params=pltpu.CompilerParams(
            dimension_semantics=("parallel", "parallel"),
        ),
    )(x2d, w_rows, b_rows)

    return out2d.reshape(B, C, H, W)


def add_forward_ref(x, weights, biases):
    """Pure-JAX reference mirroring the PyTorch module semantics exactly."""
    tensors = [
        weights[k][None, :, None, None] * x + biases[k][None, :, None, None]
        for k in range(weights.shape[0])
    ]
    return sum(tensors)


if __name__ == "__main__":
    key = jax.random.PRNGKey(0)
    kx, kw, kb = jax.random.split(key, 3)

    B, C, H, W = 2, 4, 16, 16
    K = 3  # number of synthetic "add modules"

    x = jax.random.normal(kx, (B, C, H, W), dtype=jnp.float32)
    weights = jax.random.normal(kw, (K, C), dtype=jnp.float32)
    biases = jax.random.normal(kb, (K, C), dtype=jnp.float32)

    out = add_forward(x, weights, biases)
    out = jax.block_until_ready(out)

    ref = add_forward_ref(x, weights, biases)
    assert out.shape == (B, C, H, W)
    assert jnp.allclose(out, ref, atol=1e-5, rtol=1e-5), "mismatch vs reference"

    print("KERNEL_OK")
</pallas_src>

<mosaic_0001>
module attributes {stable_mosaic.version = 11 : i64} {
  func.func @_add_kernel(%arg0: i32, %arg1: i32, %arg2: memref<8x256xf32, #tpu.memory_space<vmem>>, %arg3: memref<8x1xf32, #tpu.memory_space<vmem>>, %arg4: memref<8x1xf32, #tpu.memory_space<vmem>>, %arg5: memref<8x256xf32, #tpu.memory_space<vmem>>) attributes {dimension_semantics = [#tpu.dimension_semantics<parallel>, #tpu.dimension_semantics<parallel>], iteration_bounds = array<i64: 1, 1>, scalar_prefetch = 0 : i64, scratch_operands = 0 : i64, tpu.core_type = #tpu.core_type<tc>, window_params = [{transform_indices = @transform_0, window_bounds = array<i64: 8, 256>}, {transform_indices = @transform_1, window_bounds = array<i64: 8, 1>}, {transform_indices = @transform_2, window_bounds = array<i64: 8, 1>}, {transform_indices = @transform_3, window_bounds = array<i64: 8, 256>}]} {
    %c0 = arith.constant 0 : index
    %c0_0 = arith.constant 0 : index
    %0 = vector.load %arg3[%c0, %c0_0] : memref<8x1xf32, #tpu.memory_space<vmem>>, vector<8x1xf32>
    %c0_1 = arith.constant 0 : index
    %c0_2 = arith.constant 0 : index
    %1 = vector.load %arg2[%c0_1, %c0_2] : memref<8x256xf32, #tpu.memory_space<vmem>>, vector<8x256xf32>
    %2 = vector.broadcast %0 : vector<8x1xf32> to vector<8x256xf32>
    %3 = arith.mulf %2, %1 : vector<8x256xf32>
    %c0_3 = arith.constant 0 : index
    %c0_4 = arith.constant 0 : index
    %4 = vector.load %arg4[%c0_3, %c0_4] : memref<8x1xf32, #tpu.memory_space<vmem>>, vector<8x1xf32>
    %5 = vector.broadcast %4 : vector<8x1xf32> to vector<8x256xf32>
    %6 = arith.addf %3, %5 : vector<8x256xf32>
    %c0_5 = arith.constant 0 : index
    %c0_6 = arith.constant 0 : index
    %7 = vector.load %arg5[%c0_5, %c0_6] : memref<8x256xf32, #tpu.memory_space<vmem>>, vector<8x256xf32>
    tpu.vector_store %arg5[%c0_5, %c0_6], %6 {strides = array<i32>} : memref<8x256xf32, #tpu.memory_space<vmem>>, vector<8x256xf32>,
    return
  }
  func.func @transform_0(%arg0: i32, %arg1: i32) -> (i32, i32) {
    %c0_i32 = arith.constant 0 : i32
    return %arg0, %arg1 : i32, i32
  }
  func.func @transform_1(%arg0: i32, %arg1: i32) -> (i32, i32) {
    %c0_i32 = arith.constant 0 : i32
    %c0_i32_0 = arith.constant 0 : i32
    return %arg0, %c0_i32 : i32, i32
  }
  func.func @transform_2(%arg0: i32, %arg1: i32) -> (i32, i32) {
    %c0_i32 = arith.constant 0 : i32
    %c0_i32_0 = arith.constant 0 : i32
    return %arg0, %c0_i32 : i32, i32
  }
  func.func @transform_3(%arg0: i32, %arg1: i32) -> (i32, i32) {
    %c0_i32 = arith.constant 0 : i32
    return %arg0, %arg1 : i32, i32
  }
}

</mosaic_0001>

<llo_original>
// kernel: tpu_custom_call.1
$region0: #{tpu_custom_call.1}
  #allocation0 [shape = 'u32[]', space=smem, size = 0x4, offset = 0x4, fixed_abs, tag = 'smem constant byte address 0x4 - core index']
  #allocation1 [shape = 'u32[72,128]{1,0:T(1,128)}', space=vmem, size = 0x9000, scoped, tag = 'internal scratch']
  %s0 = inlined_call_operand.vmem [shape: f32[8,256], index: 0, kind: input, shape index: {}]
  %s1 = inlined_call_operand.vmem [shape: f32[8,1], index: 1, kind: input, shape index: {}]
  %s2 = inlined_call_operand.vmem [shape: f32[8,1], index: 2, kind: input, shape index: {}]
  %s3 = inlined_call_operand.hbm [shape: f32[8,256], index: 3, kind: output, shape index: {}]
  %s4 = sld [smem:[#allocation0]]
  $region22: #{tpu_custom_call.1} parent=0
    _
  %s6 = ssub.s32 1, %s4
  %s7 = scalar_select 0, %s6, %s4
  $region1: #{tpu_custom_call.1} parent=0
    #allocation2 [shape = 'u8[8192]{0}', space=vmem, size = 0x2000, scoped, tag = 'output window, operand 0, single buffered']
    #allocation3 [shape = 's32[1]{0}', space=sflag, size = 0x4, scoped, tag = 'scoped memory for tpu_custom_call.1']
    %8 = vsyncpa [#allocation3], 0
    // Predicated region
    $region2: #{tpu_custom_call.1} parent=1 // pred_check
      _
    $region3: #{tpu_custom_call.1} parent=1 // pred_check_branch
      %10 = sbr.rel (0) target = $region5
    $region4: #{tpu_custom_call.1} parent=1 // pred_region
      _
    $region5: #{tpu_custom_call.1} parent=1 // pred_fallthru
      _
    // Predicated region
    $region6: #{tpu_custom_call.1} parent=1 // pred_check
      _
    $region7: #{tpu_custom_call.1} parent=1 // pred_check_branch
      %12 = sbr.rel (0) target = $region9
    $region8: #{tpu_custom_call.1} parent=1 // pred_region
      _
    $region9: #{tpu_custom_call.1} parent=1 // pred_fallthru
      _
    // Predicated region
    $region10: #{tpu_custom_call.1} parent=1 // pred_check
      _
    $region11: #{tpu_custom_call.1} parent=1 // pred_check_branch
      %14 = sbr.rel (0) target = $region13
    $region12: #{tpu_custom_call.1} parent=1 // pred_region
      _
    $region13: #{tpu_custom_call.1} parent=1 // pred_fallthru
      _
    %v15 = vld [vmem:[%s1] sm:$0xff]
    %v16 = vld [vmem:[%s0] sm:$0xff]
    %v17 = vld [vmem:[%s0 + $0x8] sm:$0xff]
    %19 = vset.pattern.permute.xlu0 0
    %20 = vperm.xlu0 %19, %v15
    %v21 = vpop.permute.xlu0 %20
    %v23 = vmul.f32 %v21, %v16
    %v24 = vmul.f32 %v21, %v17
    %v25 = vld [vmem:[%s2] sm:$0xff]
    %27 = vset.pattern.permute.xlu0 0
    %28 = vperm.xlu0 %27, %v25
    %v29 = vpop.permute.xlu0 %28
    %v31 = vadd.f32 %v23, %v29
    %v32 = vadd.f32 %v24, %v29
    %33 = vst [vmem:[#allocation2] sm:$0xff] %v31
    %34 = vst [vmem:[#allocation2 + $0x8] sm:$0xff] %v32
    // Predicated region
    $region14: #{tpu_custom_call.1} parent=1 // pred_check
      _
    $region15: #{tpu_custom_call.1} parent=1 // pred_check_branch
      %36 = sbr.rel (0) target = $region17
    $region16: #{tpu_custom_call.1} parent=1 // pred_region
      %38 = vsyncadd [#allocation3], 0
      %s40 = sshll.u32 [#allocation2], 4
      %s41 = int_to_ptr.vmem [resolvable:$true] %s40
      %s42 = sshll.u32 %s3, 4
      %s43 = int_to_ptr.hbm [resolvable:$true] %s42
      %45 = dma.vmem_to_hbm [thread:$0]  %s41, 256, %s43, [#allocation3]
    $region17: #{tpu_custom_call.1} parent=1 // pred_fallthru
      _
    // Predicated region
    $region18: #{tpu_custom_call.1} parent=1 // pred_check
      _
    $region19: #{tpu_custom_call.1} parent=1 // pred_check_branch
      %47 = sbr.rel (0) target = $region21
    $region20: #{tpu_custom_call.1} parent=1 // pred_region
      %49 = dma.done [#allocation3], 256
    $region21: #{tpu_custom_call.1} parent=1 // pred_fallthru
      _
    %50 = vsyncpa [#allocation3], 1

</llo_original>
